<compile_context>
chip_gen: v7x
topology: tpu7x:2x2x1
jax: 0.10.0
libtpu: 0.0.40
codegen_flags: <defaults>
</compile_context>

<pallas_src>
import jax
import jax.numpy as jnp
from jax.experimental import pallas as pl
from jax.experimental.pallas import tpu as pltpu


def ffn_kernel(x_ref, w1_ref, b1_ref, w2_ref, b2_ref, o_ref, acc_ref):
    """Computes one (tile_m, d) output tile; grid axis 1 walks d_ff chunks."""
    k = pl.program_id(1)

    @pl.when(k == 0)
    def _init():
        acc_ref[...] = jnp.zeros_like(acc_ref)

    # First matmul chunk: (tile_m, d) @ (d, tile_k) -> f32, bias + ReLU.
    h = jnp.dot(x_ref[...], w1_ref[...], preferred_element_type=jnp.float32)
    h = jnp.maximum(h + b1_ref[...], 0.0)
    # (Dropout = identity at inference.)
    # TODO(synk): training-mode dropout (pltpu.prng_seed + prng_random_bits
    # mask with 1/(1-p) scaling) not implemented; eval semantics only.

    # Second matmul chunk accumulates into the resident f32 scratch.
    acc_ref[...] += jnp.dot(h.astype(w2_ref.dtype), w2_ref[...],
                            preferred_element_type=jnp.float32)

    @pl.when(k == pl.num_programs(1) - 1)
    def _finalize():
        o_ref[...] = (acc_ref[...] + b2_ref[...]).astype(o_ref.dtype)


def _round_up(x, m):
    return ((x + m - 1) // m) * m


def _pick_tile_k(d_ff, preferred):
    if d_ff <= preferred:
        return d_ff
    # Largest multiple of 128 <= preferred that divides d_ff.
    for tk in range(preferred, 127, -128):
        if d_ff % tk == 0:
            return tk
    return d_ff


def feed_forward(x, w1, b1, w2, b2, *, tile_m=256, tile_k=512,
                 compute_dtype=jnp.bfloat16):
    """x: [M, d]; w1: [d, 4d]; b1: [1, 4d]; w2: [4d, d]; b2: [1, d]."""
    M, d = x.shape
    d_ff = w1.shape[1]
    out_dtype = x.dtype

    # bf16 operands (2x MXU rate, half the weight DMA), f32 accumulation.
    xc = x.astype(compute_dtype)
    w1c = w1.astype(compute_dtype)
    w2c = w2.astype(compute_dtype)
    b1c = b1.astype(jnp.float32)
    b2c = b2.astype(jnp.float32)

    # Row tile: multiple of 8 sublanes, clamped to (padded) M; pad rows so the
    # grid divides evenly.
    tm = min(tile_m, _round_up(M, 8))
    M_pad = _round_up(M, tm)
    if M_pad != M:
        xc = jnp.pad(xc, ((0, M_pad - M), (0, 0)))

    tk = _pick_tile_k(d_ff, tile_k)
    grid = (M_pad // tm, d_ff // tk)

    isz = jnp.dtype(compute_dtype).itemsize
    osz = jnp.dtype(out_dtype).itemsize
    vmem_est = (2 * tm * d * isz          # x tile (double-buffered)
                + 2 * d * tk * isz        # W1 chunk
                + 2 * tk * d * isz        # W2 chunk
                + 2 * tm * d * osz        # out tile
                + tm * d * 4              # f32 accumulator scratch
                + tm * tk * 4             # f32 hidden chunk
                + 4 * (tk + d) * 4)       # biases
    vmem_limit = min(max(int(vmem_est * 3 // 2) + (4 << 20), 32 << 20), 48 << 20)

    cost = pl.CostEstimate(
        flops=4 * M_pad * d * d_ff,       # two matmuls, 2*M*d*d_ff each
        transcendentals=0,
        bytes_accessed=(xc.size * isz + w1c.size * isz + w2c.size * isz
                        + b1c.size * 4 + b2c.size * 4 + M_pad * d * osz),
    )

    out = pl.pallas_call(
        ffn_kernel,
        out_shape=jax.ShapeDtypeStruct((M_pad, d), out_dtype),
        grid_spec=pltpu.PrefetchScalarGridSpec(
            num_scalar_prefetch=0,
            grid=grid,
            in_specs=[
                pl.BlockSpec((tm, d), lambda i, k: (i, 0)),    # x row tile
                pl.BlockSpec((d, tk), lambda i, k: (0, k)),    # W1 d_ff chunk
                pl.BlockSpec((1, tk), lambda i, k: (0, k)),    # b1 chunk
                pl.BlockSpec((tk, d), lambda i, k: (k, 0)),    # W2 d_ff chunk
                pl.BlockSpec((1, d), lambda i, k: (0, 0)),     # b2
            ],
            out_specs=pl.BlockSpec((tm, d), lambda i, k: (i, 0)),
            scratch_shapes=[pltpu.VMEM((tm, d), jnp.float32)],
        ),
        compiler_params=pltpu.CompilerParams(
            dimension_semantics=("parallel", "arbitrary"),
            vmem_limit_bytes=vmem_limit,
        ),
        cost_estimate=cost,
    )(xc, w1c, b1c, w2c, b2c)

    return out[:M]


def reference_ffn(x, w1, b1, w2, b2, compute_dtype=jnp.bfloat16):
    """Same compute-precision pipeline as the kernel (bf16 ops, f32 acc)."""
    xc = x.astype(compute_dtype)
    h = jnp.dot(xc, w1.astype(compute_dtype),
                preferred_element_type=jnp.float32) + b1.astype(jnp.float32)
    h = jnp.maximum(h, 0.0)
    y = jnp.dot(h.astype(compute_dtype), w2.astype(compute_dtype),
                preferred_element_type=jnp.float32) + b2.astype(jnp.float32)
    return y.astype(x.dtype)


if __name__ == "__main__":
    # Small but lane-dense shapes: batch=2, seq=8, d_model=128 (d_ff=512).
    batch, seq, d_model = 2, 8, 128
    d_ff = 4 * d_model
    dropout_p = 0.1  # identity in eval-mode forward

    key = jax.random.PRNGKey(0)
    k_x, k_w1, k_b1, k_w2, k_b2 = jax.random.split(key, 5)

    x = jax.random.normal(k_x, (batch, seq, d_model), dtype=jnp.float32)

    # PyTorch nn.Linear-style init; weights kept pre-transposed as [in, out].
    bound1 = 1.0 / (d_model ** 0.5)
    w1 = jax.random.uniform(k_w1, (d_model, d_ff), minval=-bound1,
                            maxval=bound1, dtype=jnp.float32)
    b1 = jax.random.uniform(k_b1, (1, d_ff), minval=-bound1,
                            maxval=bound1, dtype=jnp.float32)
    bound2 = 1.0 / (d_ff ** 0.5)
    w2 = jax.random.uniform(k_w2, (d_ff, d_model), minval=-bound2,
                            maxval=bound2, dtype=jnp.float32)
    b2 = jax.random.uniform(k_b2, (1, d_model), minval=-bound2,
                            maxval=bound2, dtype=jnp.float32)

    # Flatten leading dims (PyTorch Linear operates on the last axis).
    x2d = x.reshape(batch * seq, d_model)

    out2d = feed_forward(x2d, w1, b1, w2, b2)
    out = out2d.reshape(batch, seq, d_model)
    jax.block_until_ready(out)

    ref = reference_ffn(x2d, w1, b1, w2, b2).reshape(batch, seq, d_model)
    assert jnp.allclose(out, ref, atol=2e-2, rtol=2e-2), "mismatch vs reference"

    print("KERNEL_OK")
</pallas_src>

<mosaic_0001>
module attributes {stable_mosaic.version = 11 : i64} {
  func.func @ffn_kernel(%arg0: i32, %arg1: i32, %arg2: memref<16x128xbf16, #tpu.memory_space<vmem>>, %arg3: memref<128x512xbf16, #tpu.memory_space<vmem>>, %arg4: memref<1x512xf32, #tpu.memory_space<vmem>>, %arg5: memref<512x128xbf16, #tpu.memory_space<vmem>>, %arg6: memref<1x128xf32, #tpu.memory_space<vmem>>, %arg7: memref<16x128xf32, #tpu.memory_space<vmem>>, %arg8: memref<16x128xf32, #tpu.memory_space<vmem>>) attributes {dimension_semantics = [#tpu.dimension_semantics<parallel>, #tpu.dimension_semantics<arbitrary>], iteration_bounds = array<i64: 1, 1>, scalar_prefetch = 0 : i64, scratch_operands = 1 : i64, tpu.core_type = #tpu.core_type<tc>, window_params = [{transform_indices = @transform_0, window_bounds = array<i64: 16, 128>}, {transform_indices = @transform_1, window_bounds = array<i64: 128, 512>}, {transform_indices = @transform_2, window_bounds = array<i64: 1, 512>}, {transform_indices = @transform_3, window_bounds = array<i64: 512, 128>}, {pipeline_mode = #tpu.pipeline_mode<synchronous>, transform_indices = @transform_4, window_bounds = array<i64: 1, 128>}, {transform_indices = @transform_5, window_bounds = array<i64: 16, 128>}]} {
    %c0_i32 = arith.constant 0 : i32
    %0 = arith.cmpi eq, %arg1, %c0_i32 : i32
    %1 = arith.extui %0 : i1 to i32
    %c0_i32_0 = arith.constant 0 : i32
    %2 = arith.cmpi ne, %1, %c0_i32_0 : i32
    scf.if %2 {
      %cst_16 = arith.constant 0.000000e+00 : f32
      %20 = vector.broadcast %cst_16 : f32 to vector<16x128xf32>
      %c0_17 = arith.constant 0 : index
      %c0_18 = arith.constant 0 : index
      %21 = vector.load %arg8[%c0_17, %c0_18] : memref<16x128xf32, #tpu.memory_space<vmem>>, vector<16x128xf32>
      tpu.vector_store %arg8[%c0_17, %c0_18], %20 {strides = array<i32>} : memref<16x128xf32, #tpu.memory_space<vmem>>, vector<16x128xf32>,
    } else {
    }
    %c0 = arith.constant 0 : index
    %c0_1 = arith.constant 0 : index
    %3 = vector.load %arg2[%c0, %c0_1] : memref<16x128xbf16, #tpu.memory_space<vmem>>, vector<16x128xbf16>
    %c0_2 = arith.constant 0 : index
    %c0_3 = arith.constant 0 : index
    %4 = vector.load %arg3[%c0_2, %c0_3] : memref<128x512xbf16, #tpu.memory_space<vmem>>, vector<128x512xbf16>
    %cst = arith.constant dense<0.000000e+00> : vector<16x512xf32>
    %5 = tpu.matmul %3, %4, %cst {dimension_numbers = #tpu.dot_dimension_numbers<[1], [0], [0], [1], [0, 0, 1, 1], [], []>} : vector<16x128xbf16>, vector<128x512xbf16>, vector<16x512xf32> -> vector<16x512xf32>
    %c0_4 = arith.constant 0 : index
    %c0_5 = arith.constant 0 : index
    %6 = vector.load %arg4[%c0_4, %c0_5] : memref<1x512xf32, #tpu.memory_space<vmem>>, vector<1x512xf32>
    %7 = vector.broadcast %6 : vector<1x512xf32> to vector<16x512xf32>
    %8 = arith.addf %5, %7 : vector<16x512xf32>
    %cst_6 = arith.constant 0.000000e+00 : f32
    %9 = vector.broadcast %cst_6 : f32 to vector<16x512xf32>
    %10 = arith.maximumf %8, %9 : vector<16x512xf32>
    %c0_7 = arith.constant 0 : index
    %c0_8 = arith.constant 0 : index
    %11 = vector.load %arg8[%c0_7, %c0_8] : memref<16x128xf32, #tpu.memory_space<vmem>>, vector<16x128xf32>
    %12 = arith.truncf %10 : vector<16x512xf32> to vector<16x512xbf16>
    %c0_9 = arith.constant 0 : index
    %c0_10 = arith.constant 0 : index
    %13 = vector.load %arg5[%c0_9, %c0_10] : memref<512x128xbf16, #tpu.memory_space<vmem>>, vector<512x128xbf16>
    %cst_11 = arith.constant dense<0.000000e+00> : vector<16x128xf32>
    %14 = tpu.matmul %12, %13, %cst_11 {dimension_numbers = #tpu.dot_dimension_numbers<[1], [0], [0], [1], [0, 0, 1, 1], [], []>} : vector<16x512xbf16>, vector<512x128xbf16>, vector<16x128xf32> -> vector<16x128xf32>
    %15 = arith.addf %11, %14 : vector<16x128xf32>
    %c0_12 = arith.constant 0 : index
    %c0_13 = arith.constant 0 : index
    %16 = vector.load %arg8[%c0_12, %c0_13] : memref<16x128xf32, #tpu.memory_space<vmem>>, vector<16x128xf32>
    tpu.vector_store %arg8[%c0_12, %c0_13], %15 {strides = array<i32>} : memref<16x128xf32, #tpu.memory_space<vmem>>, vector<16x128xf32>,
    %c0_i32_14 = arith.constant 0 : i32
    %17 = arith.cmpi eq, %arg1, %c0_i32_14 : i32
    %18 = arith.extui %17 : i1 to i32
    %c0_i32_15 = arith.constant 0 : i32
    %19 = arith.cmpi ne, %18, %c0_i32_15 : i32
    scf.if %19 {
      %c0_16 = arith.constant 0 : index
      %c0_17 = arith.constant 0 : index
      %20 = vector.load %arg8[%c0_16, %c0_17] : memref<16x128xf32, #tpu.memory_space<vmem>>, vector<16x128xf32>
      %c0_18 = arith.constant 0 : index
      %c0_19 = arith.constant 0 : index
      %21 = vector.load %arg6[%c0_18, %c0_19] : memref<1x128xf32, #tpu.memory_space<vmem>>, vector<1x128xf32>
      %22 = vector.broadcast %21 : vector<1x128xf32> to vector<16x128xf32>
      %23 = arith.addf %20, %22 : vector<16x128xf32>
      %c0_20 = arith.constant 0 : index
      %c0_21 = arith.constant 0 : index
      %24 = vector.load %arg7[%c0_20, %c0_21] : memref<16x128xf32, #tpu.memory_space<vmem>>, vector<16x128xf32>
      tpu.vector_store %arg7[%c0_20, %c0_21], %23 {strides = array<i32>} : memref<16x128xf32, #tpu.memory_space<vmem>>, vector<16x128xf32>,
    } else {
    }
    return
  }
  func.func @transform_0(%arg0: i32, %arg1: i32) -> (i32, i32) {
    %c0_i32 = arith.constant 0 : i32
    %c0_i32_0 = arith.constant 0 : i32
    return %arg0, %c0_i32 : i32, i32
  }
  func.func @transform_1(%arg0: i32, %arg1: i32) -> (i32, i32) {
    %c0_i32 = arith.constant 0 : i32
    %c0_i32_0 = arith.constant 0 : i32
    return %c0_i32, %arg1 : i32, i32
  }
  func.func @transform_2(%arg0: i32, %arg1: i32) -> (i32, i32) {
    %c0_i32 = arith.constant 0 : i32
    %c0_i32_0 = arith.constant 0 : i32
    return %c0_i32, %arg1 : i32, i32
  }
  func.func @transform_3(%arg0: i32, %arg1: i32) -> (i32, i32) {
    %c0_i32 = arith.constant 0 : i32
    %c0_i32_0 = arith.constant 0 : i32
    return %arg1, %c0_i32 : i32, i32
  }
  func.func @transform_4(%arg0: i32, %arg1: i32) -> (i32, i32) {
    %c0_i32 = arith.constant 0 : i32
    %c0_i32_0 = arith.constant 0 : i32
    %c0_i32_1 = arith.constant 0 : i32
    return %c0_i32, %c0_i32_0 : i32, i32
  }
  func.func @transform_5(%arg0: i32, %arg1: i32) -> (i32, i32) {
    %c0_i32 = arith.constant 0 : i32
    %c0_i32_0 = arith.constant 0 : i32
    return %arg0, %c0_i32 : i32, i32
  }
}

</mosaic_0001>

<llo_original>
// kernel: tpu_custom_call.1
$region0: #{tpu_custom_call.1}
  #allocation0 [shape = 'u32[]', space=smem, size = 0x4, offset = 0x4, fixed_abs, tag = 'smem constant byte address 0x4 - core index']
  #allocation1 [shape = 'u32[144,128]{1,0:T(1,128)}', space=vmem, size = 0x12000, scoped, tag = 'internal scratch']
  #allocation2 [shape = 'f32[16,128]{1,0:T(8,128)}', space=vmem, size = 0x2000, scoped, tag = 'scratch operand']
  %s0 = inlined_call_operand.hbm [shape: bf16[16,128], index: 0, kind: input, shape index: {}]
  %s1 = inlined_call_operand.hbm [shape: bf16[128,512], index: 1, kind: input, shape index: {}]
  %s2 = inlined_call_operand.vmem [shape: f32[1,512], index: 2, kind: input, shape index: {}]
  %s3 = inlined_call_operand.hbm [shape: bf16[512,128], index: 3, kind: input, shape index: {}]
  %s4 = inlined_call_operand.vmem [shape: f32[1,128], index: 4, kind: input, shape index: {}]
  %s5 = inlined_call_operand.hbm [shape: f32[16,128], index: 5, kind: output, shape index: {}]
  %s6 = sld [smem:[#allocation0]]
  $region50: #{tpu_custom_call.1} parent=0
    _
  %s8 = ssub.s32 1, %s6
  %s9 = scalar_select 0, %s8, %s6
  $region1: #{tpu_custom_call.1} parent=0
    #allocation3 [shape = 'u8[4096]{0}', space=vmem, size = 0x1000, scoped, tag = 'input window, operand 0, single buffered']
    #allocation4 [shape = 's32[1]{0}', space=sflag, size = 0x4, scoped, tag = 'scoped memory for tpu_custom_call.1']
    #allocation5 [shape = 's32[1]{0}', space=sflag, size = 0x4, scoped, tag = 'scoped memory for tpu_custom_call.1']
    #allocation6 [shape = 'u8[131072]{0}', space=vmem, size = 0x20000, scoped, tag = 'input window, operand 1, single buffered']
    #allocation7 [shape = 's32[1]{0}', space=sflag, size = 0x4, scoped, tag = 'scoped memory for tpu_custom_call.1']
    #allocation8 [shape = 'u8[131072]{0}', space=vmem, size = 0x20000, scoped, tag = 'input window, operand 3, single buffered']
    #allocation9 [shape = 'u8[8192]{0}', space=vmem, size = 0x2000, scoped, tag = 'output window, operand 0, single buffered']
    %10 = vsyncpa [#allocation4], 0
    %11 = vsyncpa [#allocation7], 0
    %12 = vsyncpa [#allocation5], 0
    // Predicated region
    $region2: #{tpu_custom_call.1} parent=1 // pred_check
      _
    $region3: #{tpu_custom_call.1} parent=1 // pred_check_branch
      %14 = sbr.rel (0) target = $region5
    $region4: #{tpu_custom_call.1} parent=1 // pred_region
      %s16 = ssub.s32 128, 128
      %17 = vsyncadd [#allocation4], %s16
      %s18 = sshll.u32 [#allocation3], 4
      %s19 = int_to_ptr.vmem [resolvable:$true] %s18
      %24 = dma.hbm_to_vmem [thread:$0]  %s0, 128, %s19, [#allocation4], 64, 64, 4
    $region5: #{tpu_custom_call.1} parent=1 // pred_fallthru
      _
    // Predicated region
    $region6: #{tpu_custom_call.1} parent=1 // pred_check
      _
    $region7: #{tpu_custom_call.1} parent=1 // pred_check_branch
      %26 = sbr.rel (0) target = $region9
    $region8: #{tpu_custom_call.1} parent=1 // pred_region
      %s28 = ssub.s32 4096, 4096
      %29 = vsyncadd [#allocation7], %s28
      %s30 = sshll.u32 [#allocation6], 4
      %s31 = int_to_ptr.vmem [resolvable:$true] %s30
      %36 = dma.hbm_to_vmem [thread:$0]  %s1, 4096, %s31, [#allocation7], 256, 256, 16
    $region9: #{tpu_custom_call.1} parent=1 // pred_fallthru
      _
    // Predicated region
    $region10: #{tpu_custom_call.1} parent=1 // pred_check
      _
    $region11: #{tpu_custom_call.1} parent=1 // pred_check_branch
      %38 = sbr.rel (0) target = $region13
    $region12: #{tpu_custom_call.1} parent=1 // pred_region
      _
    $region13: #{tpu_custom_call.1} parent=1 // pred_fallthru
      _
    // Predicated region
    $region14: #{tpu_custom_call.1} parent=1 // pred_check
      _
    $region15: #{tpu_custom_call.1} parent=1 // pred_check_branch
      %40 = sbr.rel (0) target = $region17
    $region16: #{tpu_custom_call.1} parent=1 // pred_region
      %s42 = ssub.s32 4096, 4096
      %43 = vsyncadd [#allocation7], %s42
      %s44 = sshll.u32 [#allocation8], 4
      %s45 = int_to_ptr.vmem [resolvable:$true] %s44
      %50 = dma.hbm_to_vmem [thread:$0]  %s3, 4096, %s45, [#allocation7], 64, 64, 4
    $region17: #{tpu_custom_call.1} parent=1 // pred_fallthru
      _
    // Predicated region
    $region18: #{tpu_custom_call.1} parent=1 // pred_check
      _
    $region19: #{tpu_custom_call.1} parent=1 // pred_check_branch
      %52 = sbr.rel (0) target = $region21
    $region20: #{tpu_custom_call.1} parent=1 // pred_region
      _
    $region21: #{tpu_custom_call.1} parent=1 // pred_fallthru
      _
    // Predicated region
    $region22: #{tpu_custom_call.1} parent=1 // pred_check
      _
    $region23: #{tpu_custom_call.1} parent=1 // pred_check_branch
      %54 = sbr.rel (0) target = $region25
    $region24: #{tpu_custom_call.1} parent=1 // pred_region
      %55 = dma.done [#allocation4], 128
    $region25: #{tpu_custom_call.1} parent=1 // pred_fallthru
      _
    // Predicated region
    $region26: #{tpu_custom_call.1} parent=1 // pred_check
      _
    $region27: #{tpu_custom_call.1} parent=1 // pred_check_branch
      %57 = sbr.rel (0) target = $region29
    $region28: #{tpu_custom_call.1} parent=1 // pred_region
      %58 = dma.done [#allocation7], 4096
    $region29: #{tpu_custom_call.1} parent=1 // pred_fallthru
      _
    // Predicated region
    $region30: #{tpu_custom_call.1} parent=1 // pred_check
      _
    $region31: #{tpu_custom_call.1} parent=1 // pred_check_branch
      %60 = sbr.rel (0) target = $region33
    $region32: #{tpu_custom_call.1} parent=1 // pred_region
      %61 = dma.done [#allocation7], 4096
    $region33: #{tpu_custom_call.1} parent=1 // pred_fallthru
      _
    %p63 = scmp.eq.s32.totalorder 0, 0
    // Predicated region
    $region34: #{tpu_custom_call.1} parent=1 // pred_check
      %p64 = pneg %p63
    $region35: #{tpu_custom_call.1} parent=1 // pred_check_branch
      %66 = sbr.rel (%p64) target = $region37
    $region36: #{tpu_custom_call.1} parent=1 // pred_region
      %67 = vst [vmem:[#allocation2] sm:$0xff] 0.0
      %68 = vst [vmem:[#allocation2 + $0x8] sm:$0xff] 0.0
    $region37: #{tpu_custom_call.1} parent=1 // pred_fallthru
      _
    %v69 = vld [vmem:[#allocation3] sm:$0xf]
    %v70 = vld [vmem:[#allocation3 + $0x4] sm:$0xf]
    %v71 = vld [vmem:[#allocation6] sm:$0xff]
    %v72 = vld [vmem:[#allocation6 + $0x8] sm:$0xff]
    %v73 = vld [vmem:[#allocation6 + $0x10] sm:$0xff]
    %v74 = vld [vmem:[#allocation6 + $0x18] sm:$0xff]
    %v75 = vld [vmem:[#allocation6 + $0x20] sm:$0xff]
    %v76 = vld [vmem:[#allocation6 + $0x28] sm:$0xff]
    %v77 = vld [vmem:[#allocation6 + $0x30] sm:$0xff]
    %v78 = vld [vmem:[#allocation6 + $0x38] sm:$0xff]
    %v79 = vld [vmem:[#allocation6 + $0x40] sm:$0xff]
    %v80 = vld [vmem:[#allocation6 + $0x48] sm:$0xff]
    %v81 = vld [vmem:[#allocation6 + $0x50] sm:$0xff]
    %v82 = vld [vmem:[#allocation6 + $0x58] sm:$0xff]
    %v83 = vld [vmem:[#allocation6 + $0x60] sm:$0xff]
    %v84 = vld [vmem:[#allocation6 + $0x68] sm:$0xff]
    %v85 = vld [vmem:[#allocation6 + $0x70] sm:$0xff]
    %v86 = vld [vmem:[#allocation6 + $0x78] sm:$0xff]
    %v87 = vld [vmem:[#allocation6 + $0x80] sm:$0xff]
    %v88 = vld [vmem:[#allocation6 + $0x88] sm:$0xff]
    %v89 = vld [vmem:[#allocation6 + $0x90] sm:$0xff]
    %v90 = vld [vmem:[#allocation6 + $0x98] sm:$0xff]
    %v91 = vld [vmem:[#allocation6 + $0xa0] sm:$0xff]
    %v92 = vld [vmem:[#allocation6 + $0xa8] sm:$0xff]
    %v93 = vld [vmem:[#allocation6 + $0xb0] sm:$0xff]
    %v94 = vld [vmem:[#allocation6 + $0xb8] sm:$0xff]
    %v95 = vld [vmem:[#allocation6 + $0xc0] sm:$0xff]
    %v96 = vld [vmem:[#allocation6 + $0xc8] sm:$0xff]
    %v97 = vld [vmem:[#allocation6 + $0xd0] sm:$0xff]
    %v98 = vld [vmem:[#allocation6 + $0xd8] sm:$0xff]
    %v99 = vld [vmem:[#allocation6 + $0xe0] sm:$0xff]
    %v100 = vld [vmem:[#allocation6 + $0xe8] sm:$0xff]
    %v101 = vld [vmem:[#allocation6 + $0xf0] sm:$0xff]
    %v102 = vld [vmem:[#allocation6 + $0xf8] sm:$0xff]
    %v103 = vld [vmem:[%s2] sm:$0xf]
    %v105 = vlaneseq
    %v106 = vshrl.u32 %v105, 7
    %v107 = vsub.s32 0, %v106
    %v108 = vrot.slane %v103, %v107
    %v109 = vlaneseq
    %v110 = vshrl.u32 %v109, 7
    %v111 = vsub.s32 1, %v110
    %v112 = vrot.slane %v103, %v111
    %v113 = vlaneseq
    %v114 = vshrl.u32 %v113, 7
    %v115 = vsub.s32 2, %v114
    %v116 = vrot.slane %v103, %v115
    %v117 = vlaneseq
    %v118 = vshrl.u32 %v117, 7
    %v119 = vsub.s32 3, %v118
    %v120 = vrot.slane %v103, %v119
    %v127 = vunpack.c.l.b16 %v69
    %v128 = vunpack.c.l.b16 %v70
    %v129 = vpack.c.b16 %v128, %v127
    %v163 = vunpack.c.l.b16 %v71
    %v164 = vunpack.c.h.b16 %v71
    %v165 = vunpack.c.l.b16 %v72
    %v166 = vunpack.c.h.b16 %v72
    %v167 = vunpack.c.l.b16 %v73
    %v168 = vunpack.c.h.b16 %v73
    %v169 = vunpack.c.l.b16 %v74
    %v170 = vunpack.c.h.b16 %v74
    %v171 = vunpack.c.l.b16 %v75
    %v172 = vunpack.c.h.b16 %v75
    %v173 = vunpack.c.l.b16 %v76
    %v174 = vunpack.c.h.b16 %v76
    %v175 = vunpack.c.l.b16 %v77
    %v176 = vunpack.c.h.b16 %v77
    %v177 = vunpack.c.l.b16 %v78
    %v178 = vunpack.c.h.b16 %v78
    %v179 = vunpack.c.l.b16 %v79
    %v180 = vunpack.c.h.b16 %v79
    %v181 = vunpack.c.l.b16 %v80
    %v182 = vunpack.c.h.b16 %v80
    %v183 = vunpack.c.l.b16 %v81
    %v184 = vunpack.c.h.b16 %v81
    %v185 = vunpack.c.l.b16 %v82
    %v186 = vunpack.c.h.b16 %v82
    %v187 = vunpack.c.l.b16 %v83
    %v188 = vunpack.c.h.b16 %v83
    %v189 = vunpack.c.l.b16 %v84
    %v190 = vunpack.c.h.b16 %v84
    %v191 = vunpack.c.l.b16 %v85
    %v192 = vunpack.c.h.b16 %v85
    %v193 = vunpack.c.l.b16 %v86
    %v194 = vunpack.c.h.b16 %v86
    %v195 = vunpack.c.l.b16 %v87
    %v196 = vunpack.c.h.b16 %v87
    %v197 = vunpack.c.l.b16 %v88
    %v198 = vunpack.c.h.b16 %v88
    %v199 = vunpack.c.l.b16 %v89
    %v200 = vunpack.c.h.b16 %v89
    %v201 = vunpack.c.l.b16 %v90
    %v202 = vunpack.c.h.b16 %v90
    %v203 = vunpack.c.l.b16 %v91
    %v204 = vunpack.c.h.b16 %v91
    %v205 = vunpack.c.l.b16 %v92
    %v206 = vunpack.c.h.b16 %v92
    %v207 = vunpack.c.l.b16 %v93
    %v208 = vunpack.c.h.b16 %v93
    %v209 = vunpack.c.l.b16 %v94
    %v210 = vunpack.c.h.b16 %v94
    %v211 = vunpack.c.l.b16 %v95
    %v212 = vunpack.c.h.b16 %v95
    %v213 = vunpack.c.l.b16 %v96
    %v214 = vunpack.c.h.b16 %v96
    %v215 = vunpack.c.l.b16 %v97
    %v216 = vunpack.c.h.b16 %v97
    %v217 = vunpack.c.l.b16 %v98
    %v218 = vunpack.c.h.b16 %v98
    %v219 = vunpack.c.l.b16 %v99
    %v220 = vunpack.c.h.b16 %v99
    %v221 = vunpack.c.l.b16 %v100
    %v222 = vunpack.c.h.b16 %v100
    %v223 = vunpack.c.l.b16 %v101
    %v224 = vunpack.c.h.b16 %v101
    %v225 = vunpack.c.l.b16 %v102
    %v226 = vunpack.c.h.b16 %v102
    %v227 = vpack.c.b16 %v167, %v163
    %v228 = vpack.c.b16 %v168, %v164
    %v229 = vpack.c.b16 %v169, %v165
    %v230 = vpack.c.b16 %v170, %v166
    %v231 = vpack.c.b16 %v175, %v171
    %v232 = vpack.c.b16 %v176, %v172
    %v233 = vpack.c.b16 %v177, %v173
    %v234 = vpack.c.b16 %v178, %v174
    %v235 = vpack.c.b16 %v183, %v179
    %v236 = vpack.c.b16 %v184, %v180
    %v237 = vpack.c.b16 %v185, %v181
    %v238 = vpack.c.b16 %v186, %v182
    %v239 = vpack.c.b16 %v191, %v187
    %v240 = vpack.c.b16 %v192, %v188
    %v241 = vpack.c.b16 %v193, %v189
    %v242 = vpack.c.b16 %v194, %v190
    %v243 = vpack.c.b16 %v199, %v195
    %v244 = vpack.c.b16 %v200, %v196
    %v245 = vpack.c.b16 %v201, %v197
    %v246 = vpack.c.b16 %v202, %v198
    %v247 = vpack.c.b16 %v207, %v203
    %v248 = vpack.c.b16 %v208, %v204
    %v249 = vpack.c.b16 %v209, %v205
    %v250 = vpack.c.b16 %v210, %v206
    %v251 = vpack.c.b16 %v215, %v211
    %v252 = vpack.c.b16 %v216, %v212
    %v253 = vpack.c.b16 %v217, %v213
    %v254 = vpack.c.b16 %v218, %v214
    %v255 = vpack.c.b16 %v223, %v219
    %v256 = vpack.c.b16 %v224, %v220
    %v257 = vpack.c.b16 %v225, %v221
    %v258 = vpack.c.b16 %v226, %v222
    %291 = vmatprep.subr.bf16.mxu0 %v228
    %292 = vmatpush1.bf16.msra.mxu0 %v227
    %293 = vmatprep.subr.bf16.mxu0 %v232
    %294 = vmatpush1.bf16.msra.mxu0 %v231
    %295 = vmatprep.subr.bf16.mxu0 %v236
    %296 = vmatpush1.bf16.msra.mxu0 %v235
    %297 = vmatprep.subr.bf16.mxu0 %v240
    %298 = vmatpush1.bf16.msra.mxu0 %v239
    %299 = vmatprep.subr.bf16.mxu0 %v244
    %300 = vmatpush1.bf16.msra.mxu0 %v243
    %301 = vmatprep.subr.bf16.mxu0 %v248
    %302 = vmatpush1.bf16.msra.mxu0 %v247
    %303 = vmatprep.subr.bf16.mxu0 %v252
    %304 = vmatpush1.bf16.msra.mxu0 %v251
    %305 = vmatprep.subr.bf16.mxu0 %v256
    %306 = vmatpush1.bf16.msra.mxu0 %v255
    %307 = vmatprep.subr.bf16.mxu0 0
    %308 = vmatpush1.bf16.msra.mxu0 0
    %309 = vmatprep.subr.bf16.mxu0 0
    %310 = vmatpush1.bf16.msra.mxu0 0
    %311 = vmatprep.subr.bf16.mxu0 0
    %312 = vmatpush1.bf16.msra.mxu0 0
    %313 = vmatprep.subr.bf16.mxu0 0
    %314 = vmatpush1.bf16.msra.mxu0 0
    %315 = vmatprep.subr.bf16.mxu0 0
    %316 = vmatpush1.bf16.msra.mxu0 0
    %317 = vmatprep.subr.bf16.mxu0 0
    %318 = vmatpush1.bf16.msra.mxu0 0
    %319 = vmatprep.subr.bf16.mxu0 0
    %320 = vmatpush1.bf16.msra.mxu0 0
    %321 = vmatprep.subr.bf16.mxu0 0
    %322 = vmatpush1.bf16.msra.mxu0 0
    %323 = vmatprep.mubr.bf16.mxu0 0
    %324 = vmatmul.mubr.bf16.gmra.mrb[0].mxu0 %v129
    %v325 = vpop.f32.mrb[0].mxu0
    %v326 = vadd.f32 %v108, %v325
    %v327 = vpop.f32.mrb[0].mxu0
    %v328 = vadd.f32 %v112, %v327
    %v329 = vpop.f32.mrb[0].mxu0
    %v330 = vadd.f32 %v108, %v329
    %v331 = vpop.f32.mrb[0].mxu0
    %v332 = vadd.f32 %v112, %v331
    %333 = vdwg.mxu0
    %334 = vmatprep.subr.bf16.mxu0 %v230
    %335 = vmatpush1.bf16.msra.mxu0 %v229
    %336 = vmatprep.subr.bf16.mxu0 %v234
    %337 = vmatpush1.bf16.msra.mxu0 %v233
    %338 = vmatprep.subr.bf16.mxu0 %v238
    %339 = vmatpush1.bf16.msra.mxu0 %v237
    %340 = vmatprep.subr.bf16.mxu0 %v242
    %341 = vmatpush1.bf16.msra.mxu0 %v241
    %342 = vmatprep.subr.bf16.mxu0 %v246
    %343 = vmatpush1.bf16.msra.mxu0 %v245
    %344 = vmatprep.subr.bf16.mxu0 %v250
    %345 = vmatpush1.bf16.msra.mxu0 %v249
    %346 = vmatprep.subr.bf16.mxu0 %v254
    %347 = vmatpush1.bf16.msra.mxu0 %v253
    %348 = vmatprep.subr.bf16.mxu0 %v258
    %349 = vmatpush1.bf16.msra.mxu0 %v257
    %350 = vmatprep.subr.bf16.mxu0 0
    %351 = vmatpush1.bf16.msra.mxu0 0
    %352 = vmatprep.subr.bf16.mxu0 0
    %353 = vmatpush1.bf16.msra.mxu0 0
    %354 = vmatprep.subr.bf16.mxu0 0
    %355 = vmatpush1.bf16.msra.mxu0 0
    %356 = vmatprep.subr.bf16.mxu0 0
    %357 = vmatpush1.bf16.msra.mxu0 0
    %358 = vmatprep.subr.bf16.mxu0 0
    %359 = vmatpush1.bf16.msra.mxu0 0
    %360 = vmatprep.subr.bf16.mxu0 0
    %361 = vmatpush1.bf16.msra.mxu0 0
    %362 = vmatprep.subr.bf16.mxu0 0
    %363 = vmatpush1.bf16.msra.mxu0 0
    %364 = vmatprep.subr.bf16.mxu0 0
    %365 = vmatpush1.bf16.msra.mxu0 0
    %366 = vmatprep.mubr.bf16.mxu0 0
    %367 = vmatmul.mubr.bf16.gmra.mrb[0].mxu0 %v129
    %v368 = vpop.f32.mrb[0].mxu0
    %v369 = vadd.f32 %v116, %v368
    %v370 = vpop.f32.mrb[0].mxu0
    %v371 = vadd.f32 %v120, %v370
    %v372 = vpop.f32.mrb[0].mxu0
    %v373 = vadd.f32 %v116, %v372
    %v374 = vpop.f32.mrb[0].mxu0
    %v375 = vadd.f32 %v120, %v374
    %376 = vdwg.mxu0
    %v377 = vmax.f32 %v326, 0.0
    %v378 = vmax.f32 %v328, 0.0
    %v379 = vmax.f32 %v369, 0.0
    %v380 = vmax.f32 %v371, 0.0
    %v381 = vmax.f32 %v330, 0.0
    %v382 = vmax.f32 %v332, 0.0
    %v383 = vmax.f32 %v373, 0.0
    %v384 = vmax.f32 %v375, 0.0
    %v385 = vld [vmem:[#allocation2] sm:$0xff]
    %v386 = vld [vmem:[#allocation2 + $0x8] sm:$0xff]
    %v387 = vpack.c.bf16 %v381, %v377
    %v388 = vpack.c.bf16 %v382, %v378
    %v389 = vpack.c.bf16 %v383, %v379
    %v390 = vpack.c.bf16 %v384, %v380
    %v391 = vld [vmem:[#allocation8] sm:$0xf]
    %v392 = vld [vmem:[#allocation8 + $0x4] sm:$0xf]
    %v393 = vld [vmem:[#allocation8 + $0x8] sm:$0xf]
    %v394 = vld [vmem:[#allocation8 + $0xc] sm:$0xf]
    %v395 = vld [vmem:[#allocation8 + $0x10] sm:$0xf]
    %v396 = vld [vmem:[#allocation8 + $0x14] sm:$0xf]
    %v397 = vld [vmem:[#allocation8 + $0x18] sm:$0xf]
    %v398 = vld [vmem:[#allocation8 + $0x1c] sm:$0xf]
    %v399 = vld [vmem:[#allocation8 + $0x20] sm:$0xf]
    %v400 = vld [vmem:[#allocation8 + $0x24] sm:$0xf]
    %v401 = vld [vmem:[#allocation8 + $0x28] sm:$0xf]
    %v402 = vld [vmem:[#allocation8 + $0x2c] sm:$0xf]
    %v403 = vld [vmem:[#allocation8 + $0x30] sm:$0xf]
    %v404 = vld [vmem:[#allocation8 + $0x34] sm:$0xf]
    %v405 = vld [vmem:[#allocation8 + $0x38] sm:$0xf]
    %v406 = vld [vmem:[#allocation8 + $0x3c] sm:$0xf]
    %v407 = vld [vmem:[#allocation8 + $0x40] sm:$0xf]
    %v408 = vld [vmem:[#allocation8 + $0x44] sm:$0xf]
    %v409 = vld [vmem:[#allocation8 + $0x48] sm:$0xf]
    %v410 = vld [vmem:[#allocation8 + $0x4c] sm:$0xf]
    %v411 = vld [vmem:[#allocation8 + $0x50] sm:$0xf]
    %v412 = vld [vmem:[#allocation8 + $0x54] sm:$0xf]
    %v413 = vld [vmem:[#allocation8 + $0x58] sm:$0xf]
    %v414 = vld [vmem:[#allocation8 + $0x5c] sm:$0xf]
    %v415 = vld [vmem:[#allocation8 + $0x60] sm:$0xf]
    %v416 = vld [vmem:[#allocation8 + $0x64] sm:$0xf]
    %v417 = vld [vmem:[#allocation8 + $0x68] sm:$0xf]
    %v418 = vld [vmem:[#allocation8 + $0x6c] sm:$0xf]
    %v419 = vld [vmem:[#allocation8 + $0x70] sm:$0xf]
    %v420 = vld [vmem:[#allocation8 + $0x74] sm:$0xf]
    %v421 = vld [vmem:[#allocation8 + $0x78] sm:$0xf]
    %v422 = vld [vmem:[#allocation8 + $0x7c] sm:$0xf]
    %v423 = vld [vmem:[#allocation8 + $0x80] sm:$0xf]
    %v424 = vld [vmem:[#allocation8 + $0x84] sm:$0xf]
    %v425 = vld [vmem:[#allocation8 + $0x88] sm:$0xf]
    %v426 = vld [vmem:[#allocation8 + $0x8c] sm:$0xf]
    %v427 = vld [vmem:[#allocation8 + $0x90] sm:$0xf]
    %v428 = vld [vmem:[#allocation8 + $0x94] sm:$0xf]
    %v429 = vld [vmem:[#allocation8 + $0x98] sm:$0xf]
    %v430 = vld [vmem:[#allocation8 + $0x9c] sm:$0xf]
    %v431 = vld [vmem:[#allocation8 + $0xa0] sm:$0xf]
    %v432 = vld [vmem:[#allocation8 + $0xa4] sm:$0xf]
    %v433 = vld [vmem:[#allocation8 + $0xa8] sm:$0xf]
    %v434 = vld [vmem:[#allocation8 + $0xac] sm:$0xf]
    %v435 = vld [vmem:[#allocation8 + $0xb0] sm:$0xf]
    %v436 = vld [vmem:[#allocation8 + $0xb4] sm:$0xf]
    %v437 = vld [vmem:[#allocation8 + $0xb8] sm:$0xf]
    %v438 = vld [vmem:[#allocation8 + $0xbc] sm:$0xf]
    %v439 = vld [vmem:[#allocation8 + $0xc0] sm:$0xf]
    %v440 = vld [vmem:[#allocation8 + $0xc4] sm:$0xf]
    %v441 = vld [vmem:[#allocation8 + $0xc8] sm:$0xf]
    %v442 = vld [vmem:[#allocation8 + $0xcc] sm:$0xf]
    %v443 = vld [vmem:[#allocation8 + $0xd0] sm:$0xf]
    %v444 = vld [vmem:[#allocation8 + $0xd4] sm:$0xf]
    %v445 = vld [vmem:[#allocation8 + $0xd8] sm:$0xf]
    %v446 = vld [vmem:[#allocation8 + $0xdc] sm:$0xf]
    %v447 = vld [vmem:[#allocation8 + $0xe0] sm:$0xf]
    %v448 = vld [vmem:[#allocation8 + $0xe4] sm:$0xf]
    %v449 = vld [vmem:[#allocation8 + $0xe8] sm:$0xf]
    %v450 = vld [vmem:[#allocation8 + $0xec] sm:$0xf]
    %v451 = vld [vmem:[#allocation8 + $0xf0] sm:$0xf]
    %v452 = vld [vmem:[#allocation8 + $0xf4] sm:$0xf]
    %v453 = vld [vmem:[#allocation8 + $0xf8] sm:$0xf]
    %v454 = vld [vmem:[#allocation8 + $0xfc] sm:$0xf]
    %v519 = vunpack.c.l.b16 %v391
    %v520 = vunpack.c.l.b16 %v392
    %v521 = vunpack.c.l.b16 %v393
    %v522 = vunpack.c.l.b16 %v394
    %v523 = vunpack.c.l.b16 %v395
    %v524 = vunpack.c.l.b16 %v396
    %v525 = vunpack.c.l.b16 %v397
    %v526 = vunpack.c.l.b16 %v398
    %v527 = vunpack.c.l.b16 %v399
    %v528 = vunpack.c.l.b16 %v400
    %v529 = vunpack.c.l.b16 %v401
    %v530 = vunpack.c.l.b16 %v402
    %v531 = vunpack.c.l.b16 %v403
    %v532 = vunpack.c.l.b16 %v404
    %v533 = vunpack.c.l.b16 %v405
    %v534 = vunpack.c.l.b16 %v406
    %v535 = vunpack.c.l.b16 %v407
    %v536 = vunpack.c.l.b16 %v408
    %v537 = vunpack.c.l.b16 %v409
    %v538 = vunpack.c.l.b16 %v410
    %v539 = vunpack.c.l.b16 %v411
    %v540 = vunpack.c.l.b16 %v412
    %v541 = vunpack.c.l.b16 %v413
    %v542 = vunpack.c.l.b16 %v414
    %v543 = vunpack.c.l.b16 %v415
    %v544 = vunpack.c.l.b16 %v416
    %v545 = vunpack.c.l.b16 %v417
    %v546 = vunpack.c.l.b16 %v418
    %v547 = vunpack.c.l.b16 %v419
    %v548 = vunpack.c.l.b16 %v420
    %v549 = vunpack.c.l.b16 %v421
    %v550 = vunpack.c.l.b16 %v422
    %v551 = vunpack.c.l.b16 %v423
    %v552 = vunpack.c.l.b16 %v424
    %v553 = vunpack.c.l.b16 %v425
    %v554 = vunpack.c.l.b16 %v426
    %v555 = vunpack.c.l.b16 %v427
    %v556 = vunpack.c.l.b16 %v428
    %v557 = vunpack.c.l.b16 %v429
    %v558 = vunpack.c.l.b16 %v430
    %v559 = vunpack.c.l.b16 %v431
    %v560 = vunpack.c.l.b16 %v432
    %v561 = vunpack.c.l.b16 %v433
    %v562 = vunpack.c.l.b16 %v434
    %v563 = vunpack.c.l.b16 %v435
    %v564 = vunpack.c.l.b16 %v436
    %v565 = vunpack.c.l.b16 %v437
    %v566 = vunpack.c.l.b16 %v438
    %v567 = vunpack.c.l.b16 %v439
    %v568 = vunpack.c.l.b16 %v440
    %v569 = vunpack.c.l.b16 %v441
    %v570 = vunpack.c.l.b16 %v442
    %v571 = vunpack.c.l.b16 %v443
    %v572 = vunpack.c.l.b16 %v444
    %v573 = vunpack.c.l.b16 %v445
    %v574 = vunpack.c.l.b16 %v446
    %v575 = vunpack.c.l.b16 %v447
    %v576 = vunpack.c.l.b16 %v448
    %v577 = vunpack.c.l.b16 %v449
    %v578 = vunpack.c.l.b16 %v450
    %v579 = vunpack.c.l.b16 %v451
    %v580 = vunpack.c.l.b16 %v452
    %v581 = vunpack.c.l.b16 %v453
    %v582 = vunpack.c.l.b16 %v454
    %v583 = vpack.c.b16 %v520, %v519
    %v584 = vpack.c.b16 %v522, %v521
    %v585 = vpack.c.b16 %v524, %v523
    %v586 = vpack.c.b16 %v526, %v525
    %v587 = vpack.c.b16 %v528, %v527
    %v588 = vpack.c.b16 %v530, %v529
    %v589 = vpack.c.b16 %v532, %v531
    %v590 = vpack.c.b16 %v534, %v533
    %v591 = vpack.c.b16 %v536, %v535
    %v592 = vpack.c.b16 %v538, %v537
    %v593 = vpack.c.b16 %v540, %v539
    %v594 = vpack.c.b16 %v542, %v541
    %v595 = vpack.c.b16 %v544, %v543
    %v596 = vpack.c.b16 %v546, %v545
    %v597 = vpack.c.b16 %v548, %v547
    %v598 = vpack.c.b16 %v550, %v549
    %v599 = vpack.c.b16 %v552, %v551
    %v600 = vpack.c.b16 %v554, %v553
    %v601 = vpack.c.b16 %v556, %v555
    %v602 = vpack.c.b16 %v558, %v557
    %v603 = vpack.c.b16 %v560, %v559
    %v604 = vpack.c.b16 %v562, %v561
    %v605 = vpack.c.b16 %v564, %v563
    %v606 = vpack.c.b16 %v566, %v565
    %v607 = vpack.c.b16 %v568, %v567
    %v608 = vpack.c.b16 %v570, %v569
    %v609 = vpack.c.b16 %v572, %v571
    %v610 = vpack.c.b16 %v574, %v573
    %v611 = vpack.c.b16 %v576, %v575
    %v612 = vpack.c.b16 %v578, %v577
    %v613 = vpack.c.b16 %v580, %v579
    %v614 = vpack.c.b16 %v582, %v581
    %647 = vmatprep.subr.bf16.mxu0 0
    %648 = vmatpush1.bf16.msra.mxu0 %v583
    %649 = vmatprep.subr.bf16.mxu0 0
    %650 = vmatpush1.bf16.msra.mxu0 %v584
    %651 = vmatprep.subr.bf16.mxu0 0
    %652 = vmatpush1.bf16.msra.mxu0 %v585
    %653 = vmatprep.subr.bf16.mxu0 0
    %654 = vmatpush1.bf16.msra.mxu0 %v586
    %655 = vmatprep.subr.bf16.mxu0 0
    %656 = vmatpush1.bf16.msra.mxu0 %v587
    %657 = vmatprep.subr.bf16.mxu0 0
    %658 = vmatpush1.bf16.msra.mxu0 %v588
    %659 = vmatprep.subr.bf16.mxu0 0
    %660 = vmatpush1.bf16.msra.mxu0 %v589
    %661 = vmatprep.subr.bf16.mxu0 0
    %662 = vmatpush1.bf16.msra.mxu0 %v590
    %663 = vmatprep.subr.bf16.mxu0 0
    %664 = vmatpush1.bf16.msra.mxu0 %v591
    %665 = vmatprep.subr.bf16.mxu0 0
    %666 = vmatpush1.bf16.msra.mxu0 %v592
    %667 = vmatprep.subr.bf16.mxu0 0
    %668 = vmatpush1.bf16.msra.mxu0 %v593
    %669 = vmatprep.subr.bf16.mxu0 0
    %670 = vmatpush1.bf16.msra.mxu0 %v594
    %671 = vmatprep.subr.bf16.mxu0 0
    %672 = vmatpush1.bf16.msra.mxu0 %v595
    %673 = vmatprep.subr.bf16.mxu0 0
    %674 = vmatpush1.bf16.msra.mxu0 %v596
    %675 = vmatprep.subr.bf16.mxu0 0
    %676 = vmatpush1.bf16.msra.mxu0 %v597
    %677 = vmatprep.subr.bf16.mxu0 0
    %678 = vmatpush1.bf16.msra.mxu0 %v598
    %679 = vmatprep.mubr.bf16.mxu0 %v388
    %680 = vmatmul.mubr.bf16.gmra.mrb[0].mxu0 %v387
    %v681 = vpop.f32.mrb[0].mxu0
    %v682 = vadd.f32 0.0, %v681
    %v683 = vpop.f32.mrb[0].mxu0
    %v684 = vpop.f32.mrb[0].mxu0
    %v685 = vadd.f32 0.0, %v684
    %v686 = vpop.f32.mrb[0].mxu0
    %687 = vdwg.mxu0
    %688 = vmatprep.subr.bf16.mxu0 0
    %689 = vmatpush1.bf16.msra.mxu0 %v599
    %690 = vmatprep.subr.bf16.mxu0 0
    %691 = vmatpush1.bf16.msra.mxu0 %v600
    %692 = vmatprep.subr.bf16.mxu0 0
    %693 = vmatpush1.bf16.msra.mxu0 %v601
    %694 = vmatprep.subr.bf16.mxu0 0
    %695 = vmatpush1.bf16.msra.mxu0 %v602
    %696 = vmatprep.subr.bf16.mxu0 0
    %697 = vmatpush1.bf16.msra.mxu0 %v603
    %698 = vmatprep.subr.bf16.mxu0 0
    %699 = vmatpush1.bf16.msra.mxu0 %v604
    %700 = vmatprep.subr.bf16.mxu0 0
    %701 = vmatpush1.bf16.msra.mxu0 %v605
    %702 = vmatprep.subr.bf16.mxu0 0
    %703 = vmatpush1.bf16.msra.mxu0 %v606
    %704 = vmatprep.subr.bf16.mxu0 0
    %705 = vmatpush1.bf16.msra.mxu0 %v607
    %706 = vmatprep.subr.bf16.mxu0 0
    %707 = vmatpush1.bf16.msra.mxu0 %v608
    %708 = vmatprep.subr.bf16.mxu0 0
    %709 = vmatpush1.bf16.msra.mxu0 %v609
    %710 = vmatprep.subr.bf16.mxu0 0
    %711 = vmatpush1.bf16.msra.mxu0 %v610
    %712 = vmatprep.subr.bf16.mxu0 0
    %713 = vmatpush1.bf16.msra.mxu0 %v611
    %714 = vmatprep.subr.bf16.mxu0 0
    %715 = vmatpush1.bf16.msra.mxu0 %v612
    %716 = vmatprep.subr.bf16.mxu0 0
    %717 = vmatpush1.bf16.msra.mxu0 %v613
    %718 = vmatprep.subr.bf16.mxu0 0
    %719 = vmatpush1.bf16.msra.mxu0 %v614
    %720 = vmatprep.mubr.bf16.mxu0 %v390
    %721 = vmatmul.mubr.bf16.gmra.mrb[0].mxu0 %v389
    %v722 = vpop.f32.mrb[0].mxu0
    %v723 = vadd.f32 %v682, %v722
    %v724 = vpop.f32.mrb[0].mxu0
    %v725 = vpop.f32.mrb[0].mxu0
    %v726 = vadd.f32 %v685, %v725
    %v727 = vpop.f32.mrb[0].mxu0
    %728 = vdwg.mxu0
    %v729 = vadd.f32 %v385, %v723
    %v730 = vadd.f32 %v386, %v726
    %731 = vst [vmem:[#allocation2] sm:$0xff] %v729
    %732 = vst [vmem:[#allocation2 + $0x8] sm:$0xff] %v730
    // Predicated region
    $region38: #{tpu_custom_call.1} parent=1 // pred_check
      %p733 = pneg %p63
    $region39: #{tpu_custom_call.1} parent=1 // pred_check_branch
      %735 = sbr.rel (%p733) target = $region41
    $region40: #{tpu_custom_call.1} parent=1 // pred_region
      %v736 = vld [vmem:[#allocation2] sm:$0xff]
      %v737 = vld [vmem:[#allocation2 + $0x8] sm:$0xff]
      %v738 = vld [vmem:[%s4] sm:$0x1]
      %v740 = vlaneseq
      %v741 = vshrl.u32 %v740, 7
      %v742 = vsub.s32 0, %v741
      %v743 = vrot.slane %v738, %v742
      %v745 = vadd.f32 %v736, %v743
      %v746 = vadd.f32 %v737, %v743
      %747 = vst [vmem:[#allocation9] sm:$0xff] %v745
      %748 = vst [vmem:[#allocation9 + $0x8] sm:$0xff] %v746
    $region41: #{tpu_custom_call.1} parent=1 // pred_fallthru
      _
    // Predicated region
    $region42: #{tpu_custom_call.1} parent=1 // pred_check
      _
    $region43: #{tpu_custom_call.1} parent=1 // pred_check_branch
      %750 = sbr.rel (0) target = $region45
    $region44: #{tpu_custom_call.1} parent=1 // pred_region
      %s752 = ssub.s32 256, 256
      %753 = vsyncadd [#allocation5], %s752
      %s754 = sshll.u32 [#allocation9], 4
      %s755 = int_to_ptr.vmem [resolvable:$true] %s754
      %760 = dma.vmem_to_hbm [thread:$0]  %s755, 256, %s5, [#allocation5], 128, 128, 8
    $region45: #{tpu_custom_call.1} parent=1 // pred_fallthru
      _
    // Predicated region
    $region46: #{tpu_custom_call.1} parent=1 // pred_check
      _
    $region47: #{tpu_custom_call.1} parent=1 // pred_check_branch
      %762 = sbr.rel (0) target = $region49
    $region48: #{tpu_custom_call.1} parent=1 // pred_region
      %763 = dma.done [#allocation5], 256
    $region49: #{tpu_custom_call.1} parent=1 // pred_fallthru
      _
    %764 = vsyncpa [#allocation4], 1
    %765 = vsyncpa [#allocation7], 1
    %766 = vsyncpa [#allocation5], 1

</llo_original>
